<compile_context>
chip_gen: v6e
topology: v6e:2x2x1
jax: 0.10.0
libtpu: 0.0.40
codegen_flags: <defaults>
</compile_context>

<pallas_src>
import functools
import math

import jax
import jax.numpy as jnp
from jax.experimental import pallas as pl
from jax.experimental.pallas import tpu as pltpu

_LANE = 128       # last-dim (lane) alignment
_NEG_BIG = -1e30


def _round_up(x, m):
    return ((x + m - 1) // m) * m


# --------------------------------------------------------------------------
# Kernel
# --------------------------------------------------------------------------
def _fused_mlp_kernel(*refs, num_layers, n_valid):
    """Fused MLP: chained (x @ W + b) [+relu] layers, final layer + masked softmax.

    refs = (x_ref, w0_ref, b0_ref, w1_ref, b1_ref, ..., o_ref). Every ref is a
    VMEM-resident block. Weights are bf16; accumulation and all elementwise
    math are f32. `n_valid` = true dim_sortie (padded output lanes are masked
    out of the softmax).
    """
    x_ref = refs[0]
    o_ref = refs[-1]
    layer_refs = refs[1:-1]

    x = x_ref[...].astype(jnp.float32)
    for i in range(num_layers):
        w = layer_refs[2 * i][...]                       # bf16 (in_p, out_p)
        b = layer_refs[2 * i + 1][...]                   # f32  (1, out_p)
        y = jnp.dot(x.astype(w.dtype), w,
                    preferred_element_type=jnp.float32) + b
        if i < num_layers - 1:
            x = jnp.maximum(y, 0.0)                      # hidden: relu
        else:
            # final layer: softmax over dim=1, restricted to n_valid real cols
            lane = jax.lax.broadcasted_iota(jnp.int32, y.shape, dimension=1)
            y = jnp.where(lane < n_valid, y, _NEG_BIG)
            y = y - jnp.max(y, axis=-1, keepdims=True)   # stable softmax
            e = jnp.exp(y)                               # EUP
            denom = jnp.sum(e, axis=-1, keepdims=True)
            x = e / denom                                # exact: probs sum to 1
    o_ref[...] = x.astype(o_ref.dtype)


# --------------------------------------------------------------------------
# One-time parameter preparation (hoisted out of the forward path)
# --------------------------------------------------------------------------
def pad_params(params, weight_dtype=jnp.bfloat16):
    """Pad hidden/output feature dims to multiples of 128 and cast weights to bf16.

    Done ONCE at init. Zero padding keeps the math exact (padded hidden columns
    produce 0 after relu; padded weight rows contribute nothing). The first
    layer's input dim is left unpadded (full-array block in the kernel).
    """
    padded = []
    prev_dim = params[0][0].shape[0]          # dim_entree, unpadded
    for (w, b) in params:
        ip, op = w.shape
        op_p = _round_up(op, _LANE)
        w_p = jnp.pad(w, ((0, prev_dim - ip), (0, op_p - op))).astype(weight_dtype)
        b_p = jnp.pad(b, ((0, 0), (0, op_p - op))).astype(jnp.float32)
        padded.append((w_p, b_p))
        prev_dim = op_p
    return padded


# --------------------------------------------------------------------------
# Forward wrapper
# --------------------------------------------------------------------------
def politique_renforce_forward(etat, padded_params, *, n_out, batch_tile=256):
    """etat: (batch, dim_entree) f32 -> probabilities (batch, n_out) f32."""
    B, K = etat.shape
    num_layers = len(padded_params)
    Np = padded_params[-1][0].shape[1]
    flat_params = [t for wb in padded_params for t in wb]

    kernel = functools.partial(_fused_mlp_kernel,
                               num_layers=num_layers, n_valid=n_out)

    # VMEM sizing (v7x physical VMEM is only 64 MiB) and advisory cost estimate.
    param_bytes = sum(int(t.size) * t.dtype.itemsize for t in flat_params)
    feat_dims = [K] + [w.shape[1] for w, _ in padded_params]
    rows = min(B, batch_tile) if B <= batch_tile else batch_tile
    act_bytes = 4 * rows * sum(feat_dims)
    vmem_limit = min(max(2 * param_bytes + 4 * act_bytes + (2 << 20), 16 << 20),
                     64 << 20)
    flops = 2 * B * sum(feat_dims[i] * feat_dims[i + 1] for i in range(num_layers))
    cost = pl.CostEstimate(flops=flops,
                           transcendentals=B * Np,
                           bytes_accessed=param_bytes + 4 * B * (K + Np))

    if B <= batch_tile:
        # --- small batch: no grid, everything a full VMEM-resident block ---
        n_in = 1 + len(flat_params)
        out = pl.pallas_call(
            kernel,
            out_shape=jax.ShapeDtypeStruct((B, Np), jnp.float32),
            in_specs=[pl.BlockSpec(memory_space=pltpu.MemorySpace.VMEM)] * n_in,
            out_specs=pl.BlockSpec(memory_space=pltpu.MemorySpace.VMEM),
            compiler_params=pltpu.CompilerParams(vmem_limit_bytes=vmem_limit),
            cost_estimate=cost,
        )(etat, *flat_params)
        return out[:, :n_out]

    # --- large batch (trajectory updates): 1-D parallel grid over the batch ---
    Bp = _round_up(B, batch_tile)
    x_p = jnp.pad(etat, ((0, Bp - B), (0, 0)))
    in_specs = [pl.BlockSpec((batch_tile, K), lambda i: (i, 0))]
    for w, b in padded_params:
        in_specs.append(pl.BlockSpec(w.shape, lambda i: (0, 0)))   # VMEM-resident
        in_specs.append(pl.BlockSpec(b.shape, lambda i: (0, 0)))
    out = pl.pallas_call(
        kernel,
        out_shape=jax.ShapeDtypeStruct((Bp, Np), jnp.float32),
        grid=(Bp // batch_tile,),
        in_specs=in_specs,
        out_specs=pl.BlockSpec((batch_tile, Np), lambda i: (i, 0)),
        compiler_params=pltpu.CompilerParams(
            dimension_semantics=("parallel",),
            vmem_limit_bytes=vmem_limit),
        cost_estimate=cost,
    )(x_p, *flat_params)
    return out[:B, :n_out]


# --------------------------------------------------------------------------
# Init + pure-JAX reference
# --------------------------------------------------------------------------
def init_params(key, dim_entree, couche_cachee, dim_sortie):
    """nn.Linear-style init (U[-1/sqrt(fan_in), 1/sqrt(fan_in)]), weights (in, out)."""
    sizes = [dim_entree] + list(couche_cachee) + [dim_sortie]
    params = []
    for i in range(len(sizes) - 1):
        key, kw, kb = jax.random.split(key, 3)
        fan_in, fan_out = sizes[i], sizes[i + 1]
        bound = 1.0 / math.sqrt(fan_in)
        w = jax.random.uniform(kw, (fan_in, fan_out), jnp.float32, -bound, bound)
        b = jax.random.uniform(kb, (1, fan_out), jnp.float32, -bound, bound)
        params.append((w, b))
    return params


def _reference_forward(etat, padded_params, n_out):
    """Pure-JAX reference using the same (padded, bf16) weights as the kernel."""
    x = etat
    for w, b in padded_params[:-1]:
        x = jnp.maximum(x @ w.astype(jnp.float32) + b, 0.0)
    w, b = padded_params[-1]
    logits = (x @ w.astype(jnp.float32) + b)[:, :n_out]
    return jax.nn.softmax(logits, axis=1)


if __name__ == "__main__":
    # Small CartPole-like setup: obs dim 4, actions 2, hidden [64, 32], batch 2.
    batch, dim_entree, dim_sortie = 2, 4, 2
    couche_cachee = [64, 32]

    key = jax.random.PRNGKey(0)
    key, k_x = jax.random.split(key)
    etat = jax.random.normal(k_x, (batch, dim_entree), jnp.float32)
    params = init_params(key, dim_entree, couche_cachee, dim_sortie)

    # One-time: pad feature dims + cast weights to bf16 (hoisted out of forward).
    padded = pad_params(params)

    fwd = jax.jit(politique_renforce_forward, static_argnames=("n_out", "batch_tile"))
    probs = jax.block_until_ready(fwd(etat, padded, n_out=dim_sortie))

    ref = _reference_forward(etat, padded, dim_sortie)
    assert probs.shape == (batch, dim_sortie)
    assert jnp.allclose(probs, ref, atol=1e-3, rtol=1e-3)
    assert jnp.allclose(jnp.sum(probs, axis=1), 1.0, atol=1e-5)

    print("KERNEL_OK")
</pallas_src>

<mosaic_0001>
module attributes {stable_mosaic.version = 11 : i64} {
  func.func @_fused_mlp_kernel(%arg0: memref<2x4xf32, #tpu.memory_space<vmem>>, %arg1: memref<4x128xbf16, #tpu.memory_space<vmem>>, %arg2: memref<1x128xf32, #tpu.memory_space<vmem>>, %arg3: memref<128x128xbf16, #tpu.memory_space<vmem>>, %arg4: memref<1x128xf32, #tpu.memory_space<vmem>>, %arg5: memref<128x128xbf16, #tpu.memory_space<vmem>>, %arg6: memref<1x128xf32, #tpu.memory_space<vmem>>, %arg7: memref<2x128xf32, #tpu.memory_space<vmem>>) attributes {dimension_semantics = [], scalar_prefetch = 0 : i64, scratch_operands = 0 : i64, tpu.core_type = #tpu.core_type<tc>} {
    %c0 = arith.constant 0 : index
    %c0_0 = arith.constant 0 : index
    %0 = vector.load %arg0[%c0, %c0_0] : memref<2x4xf32, #tpu.memory_space<vmem>>, vector<2x4xf32>
    %c0_1 = arith.constant 0 : index
    %c0_2 = arith.constant 0 : index
    %1 = vector.load %arg1[%c0_1, %c0_2] : memref<4x128xbf16, #tpu.memory_space<vmem>>, vector<4x128xbf16>
    %c0_3 = arith.constant 0 : index
    %c0_4 = arith.constant 0 : index
    %2 = vector.load %arg2[%c0_3, %c0_4] : memref<1x128xf32, #tpu.memory_space<vmem>>, vector<1x128xf32>
    %3 = arith.truncf %0 : vector<2x4xf32> to vector<2x4xbf16>
    %cst = arith.constant dense<0.000000e+00> : vector<2x128xf32>
    %4 = tpu.matmul %3, %1, %cst {dimension_numbers = #tpu.dot_dimension_numbers<[1], [0], [0], [1], [0, 0, 1, 1], [], []>} : vector<2x4xbf16>, vector<4x128xbf16>, vector<2x128xf32> -> vector<2x128xf32>
    %5 = vector.broadcast %2 : vector<1x128xf32> to vector<2x128xf32>
    %6 = arith.addf %4, %5 : vector<2x128xf32>
    %cst_5 = arith.constant 0.000000e+00 : f32
    %7 = vector.broadcast %cst_5 : f32 to vector<2x128xf32>
    %8 = arith.maximumf %6, %7 : vector<2x128xf32>
    %c0_6 = arith.constant 0 : index
    %c0_7 = arith.constant 0 : index
    %9 = vector.load %arg3[%c0_6, %c0_7] : memref<128x128xbf16, #tpu.memory_space<vmem>>, vector<128x128xbf16>
    %c0_8 = arith.constant 0 : index
    %c0_9 = arith.constant 0 : index
    %10 = vector.load %arg4[%c0_8, %c0_9] : memref<1x128xf32, #tpu.memory_space<vmem>>, vector<1x128xf32>
    %11 = arith.truncf %8 : vector<2x128xf32> to vector<2x128xbf16>
    %cst_10 = arith.constant dense<0.000000e+00> : vector<2x128xf32>
    %12 = tpu.matmul %11, %9, %cst_10 {dimension_numbers = #tpu.dot_dimension_numbers<[1], [0], [0], [1], [0, 0, 1, 1], [], []>} : vector<2x128xbf16>, vector<128x128xbf16>, vector<2x128xf32> -> vector<2x128xf32>
    %13 = vector.broadcast %10 : vector<1x128xf32> to vector<2x128xf32>
    %14 = arith.addf %12, %13 : vector<2x128xf32>
    %cst_11 = arith.constant 0.000000e+00 : f32
    %15 = vector.broadcast %cst_11 : f32 to vector<2x128xf32>
    %16 = arith.maximumf %14, %15 : vector<2x128xf32>
    %c0_12 = arith.constant 0 : index
    %c0_13 = arith.constant 0 : index
    %17 = vector.load %arg5[%c0_12, %c0_13] : memref<128x128xbf16, #tpu.memory_space<vmem>>, vector<128x128xbf16>
    %c0_14 = arith.constant 0 : index
    %c0_15 = arith.constant 0 : index
    %18 = vector.load %arg6[%c0_14, %c0_15] : memref<1x128xf32, #tpu.memory_space<vmem>>, vector<1x128xf32>
    %19 = arith.truncf %16 : vector<2x128xf32> to vector<2x128xbf16>
    %cst_16 = arith.constant dense<0.000000e+00> : vector<2x128xf32>
    %20 = tpu.matmul %19, %17, %cst_16 {dimension_numbers = #tpu.dot_dimension_numbers<[1], [0], [0], [1], [0, 0, 1, 1], [], []>} : vector<2x128xbf16>, vector<128x128xbf16>, vector<2x128xf32> -> vector<2x128xf32>
    %21 = vector.broadcast %18 : vector<1x128xf32> to vector<2x128xf32>
    %22 = arith.addf %20, %21 : vector<2x128xf32>
    %23 = tpu.iota {dimensions = array<i32: 1>} : vector<2x128xi32>
    %c2_i32 = arith.constant 2 : i32
    %24 = vector.broadcast %c2_i32 : i32 to vector<2x128xi32>
    %25 = arith.cmpi slt, %23, %24 : vector<2x128xi32>
    %cst_17 = arith.constant -1.000000e+30 : f32
    %26 = vector.broadcast %cst_17 : f32 to vector<2x128xf32>
    %27 = arith.select %25, %22, %26 : vector<2x128xi1>, vector<2x128xf32>
    %cst_18 = arith.constant dense<0xFF800000> : vector<2xf32>
    %28 = vector.multi_reduction <maximumf>, %27, %cst_18 [1] : vector<2x128xf32> to vector<2xf32>
    %29 = vector.shape_cast %28 : vector<2xf32> to vector<2x1xf32>
    %30 = vector.broadcast %29 : vector<2x1xf32> to vector<2x128xf32>
    %31 = arith.subf %27, %30 : vector<2x128xf32>
    %32 = math.exp %31 : vector<2x128xf32>
    %cst_19 = arith.constant dense<0.000000e+00> : vector<2xf32>
    %33 = vector.multi_reduction <add>, %32, %cst_19 [1] : vector<2x128xf32> to vector<2xf32>
    %34 = vector.shape_cast %33 : vector<2xf32> to vector<2x1xf32>
    %35 = vector.broadcast %34 : vector<2x1xf32> to vector<2x128xf32>
    %36 = arith.divf %32, %35 : vector<2x128xf32>
    %c0_20 = arith.constant 0 : index
    %c0_21 = arith.constant 0 : index
    %37 = vector.load %arg7[%c0_20, %c0_21] : memref<2x128xf32, #tpu.memory_space<vmem>>, vector<2x128xf32>
    tpu.vector_store %arg7[%c0_20, %c0_21], %36 {strides = array<i32>} : memref<2x128xf32, #tpu.memory_space<vmem>>, vector<2x128xf32>,
    return
  }
}

</mosaic_0001>

<llo_original>
// kernel: politique_renforce_forward.1
$region0: #{politique_renforce_forward.1}
  #allocation0 [shape = 'u32[]', space=smem, size = 0x4, offset = 0x4, fixed_abs, tag = 'smem constant byte address 0x4 - core index']
  #allocation1 [shape = 'u32[144,128]{1,0:T(1,128)}', space=vmem, size = 0x12000, scoped, tag = 'internal scratch']
  %s0 = inlined_call_operand.hbm [shape: f32[2,4], index: 0, kind: input, shape index: {}]
  %s1 = inlined_call_operand.hbm [shape: bf16[4,128], index: 1, kind: input, shape index: {}]
  %s2 = inlined_call_operand.vmem [shape: f32[1,128], index: 2, kind: input, shape index: {}]
  %s3 = inlined_call_operand.hbm [shape: bf16[128,128], index: 3, kind: input, shape index: {}]
  %s4 = inlined_call_operand.vmem [shape: f32[1,128], index: 4, kind: input, shape index: {}]
  %s5 = inlined_call_operand.hbm [shape: bf16[128,128], index: 5, kind: input, shape index: {}]
  %s6 = inlined_call_operand.vmem [shape: f32[1,128], index: 6, kind: input, shape index: {}]
  %s7 = inlined_call_operand.hbm [shape: f32[2,128], index: 7, kind: output, shape index: {}]
  %s8 = sld [smem:[#allocation0]]
  $region54: #{politique_renforce_forward.1} parent=0
    _
  %s10 = ssub.s32 1, %s8
  %s11 = scalar_select 0, %s10, %s8
  $region1: #{politique_renforce_forward.1} parent=0
    #allocation2 [shape = 'u8[1024]{0}', space=vmem, size = 0x400, scoped, tag = 'input window, operand 0, single buffered']
    #allocation3 [shape = 's32[1]{0}', space=sflag, size = 0x4, scoped, tag = 'scoped memory for politique_renforce_forward.1']
    #allocation4 [shape = 's32[1]{0}', space=sflag, size = 0x4, scoped, tag = 'scoped memory for politique_renforce_forward.1']
    #allocation5 [shape = 'u8[1024]{0}', space=vmem, size = 0x400, scoped, tag = 'input window, operand 1, single buffered']
    #allocation6 [shape = 's32[1]{0}', space=sflag, size = 0x4, scoped, tag = 'scoped memory for politique_renforce_forward.1']
    #allocation7 [shape = 'u8[32768]{0}', space=vmem, size = 0x8000, scoped, tag = 'input window, operand 3, single buffered']
    #allocation8 [shape = 'u8[32768]{0}', space=vmem, size = 0x8000, scoped, tag = 'input window, operand 5, single buffered']
    #allocation9 [shape = 's32[1]{0}', space=sflag, size = 0x4, scoped, tag = 'scoped memory for politique_renforce_forward.1']
    #allocation10 [shape = 'u8[1024]{0}', space=vmem, size = 0x400, scoped, tag = 'output window, operand 0, single buffered']
    %12 = vsyncpa [#allocation3], 0
    %13 = vsyncpa [#allocation6], 0
    %14 = vsyncpa [#allocation9], 0
    %15 = vsyncpa [#allocation4], 0
    // Predicated region
    $region2: #{politique_renforce_forward.1} parent=1 // pred_check
      _
    $region3: #{politique_renforce_forward.1} parent=1 // pred_check_branch
      %17 = sbr.rel (0) target = $region5
    $region4: #{politique_renforce_forward.1} parent=1 // pred_region
      %s19 = ssub.s32 32, 32
      %20 = vsyncadd [#allocation3], %s19
      %s22 = sshll.u32 [#allocation2], 4
      %s23 = int_to_ptr.vmem [resolvable:$true] %s22
      %25 = dma.hbm_to_vmem [thread:$0]  %s0, 32, %s23, [#allocation3]
    $region5: #{politique_renforce_forward.1} parent=1 // pred_fallthru
      _
    // Predicated region
    $region6: #{politique_renforce_forward.1} parent=1 // pred_check
      _
    $region7: #{politique_renforce_forward.1} parent=1 // pred_check_branch
      %27 = sbr.rel (0) target = $region9
    $region8: #{politique_renforce_forward.1} parent=1 // pred_region
      %s29 = ssub.s32 32, 32
      %30 = vsyncadd [#allocation6], %s29
      %s32 = sshll.u32 [#allocation5], 4
      %s33 = int_to_ptr.vmem [resolvable:$true] %s32
      %35 = dma.hbm_to_vmem [thread:$0]  %s1, 32, %s33, [#allocation6]
    $region9: #{politique_renforce_forward.1} parent=1 // pred_fallthru
      _
    // Predicated region
    $region10: #{politique_renforce_forward.1} parent=1 // pred_check
      _
    $region11: #{politique_renforce_forward.1} parent=1 // pred_check_branch
      %37 = sbr.rel (0) target = $region13
    $region12: #{politique_renforce_forward.1} parent=1 // pred_region
      _
    $region13: #{politique_renforce_forward.1} parent=1 // pred_fallthru
      _
    // Predicated region
    $region14: #{politique_renforce_forward.1} parent=1 // pred_check
      _
    $region15: #{politique_renforce_forward.1} parent=1 // pred_check_branch
      %39 = sbr.rel (0) target = $region17
    $region16: #{politique_renforce_forward.1} parent=1 // pred_region
      %s41 = ssub.s32 1024, 1024
      %42 = vsyncadd [#allocation6], %s41
      %s43 = sshll.u32 [#allocation7], 4
      %s44 = int_to_ptr.vmem [resolvable:$true] %s43
      %49 = dma.hbm_to_vmem [thread:$0]  %s3, 1024, %s44, [#allocation6], 64, 64, 4
    $region17: #{politique_renforce_forward.1} parent=1 // pred_fallthru
      _
    // Predicated region
    $region18: #{politique_renforce_forward.1} parent=1 // pred_check
      _
    $region19: #{politique_renforce_forward.1} parent=1 // pred_check_branch
      %51 = sbr.rel (0) target = $region21
    $region20: #{politique_renforce_forward.1} parent=1 // pred_region
      _
    $region21: #{politique_renforce_forward.1} parent=1 // pred_fallthru
      _
    // Predicated region
    $region22: #{politique_renforce_forward.1} parent=1 // pred_check
      _
    $region23: #{politique_renforce_forward.1} parent=1 // pred_check_branch
      %53 = sbr.rel (0) target = $region25
    $region24: #{politique_renforce_forward.1} parent=1 // pred_region
      %s55 = ssub.s32 1024, 1024
      %56 = vsyncadd [#allocation9], %s55
      %s57 = sshll.u32 [#allocation8], 4
      %s58 = int_to_ptr.vmem [resolvable:$true] %s57
      %63 = dma.hbm_to_vmem [thread:$0]  %s5, 1024, %s58, [#allocation9], 64, 64, 4
    $region25: #{politique_renforce_forward.1} parent=1 // pred_fallthru
      _
    // Predicated region
    $region26: #{politique_renforce_forward.1} parent=1 // pred_check
      _
    $region27: #{politique_renforce_forward.1} parent=1 // pred_check_branch
      %65 = sbr.rel (0) target = $region29
    $region28: #{politique_renforce_forward.1} parent=1 // pred_region
      _
    $region29: #{politique_renforce_forward.1} parent=1 // pred_fallthru
      _
    // Predicated region
    $region30: #{politique_renforce_forward.1} parent=1 // pred_check
      _
    $region31: #{politique_renforce_forward.1} parent=1 // pred_check_branch
      %67 = sbr.rel (0) target = $region33
    $region32: #{politique_renforce_forward.1} parent=1 // pred_region
      %68 = dma.done [#allocation3], 32
    $region33: #{politique_renforce_forward.1} parent=1 // pred_fallthru
      _
    // Predicated region
    $region34: #{politique_renforce_forward.1} parent=1 // pred_check
      _
    $region35: #{politique_renforce_forward.1} parent=1 // pred_check_branch
      %70 = sbr.rel (0) target = $region37
    $region36: #{politique_renforce_forward.1} parent=1 // pred_region
      %71 = dma.done [#allocation6], 32
    $region37: #{politique_renforce_forward.1} parent=1 // pred_fallthru
      _
    // Predicated region
    $region38: #{politique_renforce_forward.1} parent=1 // pred_check
      _
    $region39: #{politique_renforce_forward.1} parent=1 // pred_check_branch
      %73 = sbr.rel (0) target = $region41
    $region40: #{politique_renforce_forward.1} parent=1 // pred_region
      %74 = dma.done [#allocation6], 1024
    $region41: #{politique_renforce_forward.1} parent=1 // pred_fallthru
      _
    // Predicated region
    $region42: #{politique_renforce_forward.1} parent=1 // pred_check
      _
    $region43: #{politique_renforce_forward.1} parent=1 // pred_check_branch
      %76 = sbr.rel (0) target = $region45
    $region44: #{politique_renforce_forward.1} parent=1 // pred_region
      %77 = dma.done [#allocation9], 1024
    $region45: #{politique_renforce_forward.1} parent=1 // pred_fallthru
      _
    %v79 = vld [vmem:[#allocation2] sm:$0x3]
    %v80 = vld [vmem:[#allocation5] sm:$0x3]
    %v81 = vld [vmem:[%s2] sm:$0x1]
    %v82 = vpack.c.bf16 %v79, %v79
    %v84 = vlaneseq
    %v85 = vshrl.u32 %v84, 7
    %v86 = vsub.s32 0, %v85
    %v87 = vrot.slane %v81, %v86
    %vm89 = vcmask 31744
    %v91 = vsel %vm89, %v82, 0
    %vm93 = vcmask 1041408
    %v95 = vsel %vm93, %v80, 0
    %97 = vmatprep.subr.bf16.mxu0 0
    %98 = vmatpush1.bf16.msra.mxu0 0
    %99 = vmatprep.subr.bf16.mxu0 0
    %100 = vmatpush1.bf16.msra.mxu0 0
    %101 = vmatprep.subr.bf16.mxu0 0
    %102 = vmatpush1.bf16.msra.mxu0 0
    %103 = vmatprep.subr.bf16.mxu0 0
    %104 = vmatpush1.bf16.msra.mxu0 0
    %105 = vmatprep.subr.bf16.mxu0 0
    %106 = vmatpush1.bf16.msra.mxu0 0
    %107 = vmatprep.subr.bf16.mxu0 0
    %108 = vmatpush1.bf16.msra.mxu0 0
    %109 = vmatprep.subr.bf16.mxu0 0
    %110 = vmatpush1.bf16.msra.mxu0 0
    %111 = vmatprep.subr.bf16.mxu0 0
    %112 = vmatpush1.bf16.msra.mxu0 %v95
    %113 = vmatprep.subr.bf16.mxu0 0
    %114 = vmatpush2.bf16.msra.mxu0 0
    %115 = vmatprep.subr.bf16.mxu0 0
    %116 = vmatpush2.bf16.msra.mxu0 0
    %117 = vmatprep.subr.bf16.mxu0 0
    %118 = vmatpush2.bf16.msra.mxu0 0
    %119 = vmatprep.subr.bf16.mxu0 0
    %120 = vmatpush2.bf16.msra.mxu0 0
    %121 = vmatprep.subr.bf16.mxu0 0
    %122 = vmatpush2.bf16.msra.mxu0 0
    %123 = vmatprep.subr.bf16.mxu0 0
    %124 = vmatpush2.bf16.msra.mxu0 0
    %125 = vmatprep.subr.bf16.mxu0 0
    %126 = vmatpush2.bf16.msra.mxu0 0
    %127 = vmatprep.subr.bf16.mxu0 0
    %128 = vmatpush2.bf16.msra.mxu0 0
    %129 = vmatprep.mubr.bf16.mxu0 0
    %130 = vmatmul.mubr.bf16.gmra.mxu0 %v91
    %v131 = vpop.f32.mrf.mxu0
    %v132 = vadd.f32 %v87, %v131
    %v133 = vpop.f32.mrf.mxu0
    %v134 = vpop.f32.mrf.mxu0
    %v135 = vpop.f32.mrf.mxu0
    %136 = vdwg.mxu0
    %v137 = vmax.f32 %v132, 0.0
    %v138 = vld [vmem:[#allocation7] sm:$0xf]
    %v139 = vld [vmem:[#allocation7 + $0x4] sm:$0xf]
    %v140 = vld [vmem:[#allocation7 + $0x8] sm:$0xf]
    %v141 = vld [vmem:[#allocation7 + $0xc] sm:$0xf]
    %v142 = vld [vmem:[#allocation7 + $0x10] sm:$0xf]
    %v143 = vld [vmem:[#allocation7 + $0x14] sm:$0xf]
    %v144 = vld [vmem:[#allocation7 + $0x18] sm:$0xf]
    %v145 = vld [vmem:[#allocation7 + $0x1c] sm:$0xf]
    %v146 = vld [vmem:[#allocation7 + $0x20] sm:$0xf]
    %v147 = vld [vmem:[#allocation7 + $0x24] sm:$0xf]
    %v148 = vld [vmem:[#allocation7 + $0x28] sm:$0xf]
    %v149 = vld [vmem:[#allocation7 + $0x2c] sm:$0xf]
    %v150 = vld [vmem:[#allocation7 + $0x30] sm:$0xf]
    %v151 = vld [vmem:[#allocation7 + $0x34] sm:$0xf]
    %v152 = vld [vmem:[#allocation7 + $0x38] sm:$0xf]
    %v153 = vld [vmem:[#allocation7 + $0x3c] sm:$0xf]
    %v154 = vld [vmem:[%s4] sm:$0x1]
    %v155 = vpack.c.bf16 %v137, %v137
    %v157 = vlaneseq
    %v158 = vshrl.u32 %v157, 7
    %v159 = vsub.s32 0, %v158
    %v160 = vrot.slane %v154, %v159
    %v178 = vunpack.c.l.b16 %v138
    %v179 = vunpack.c.l.b16 %v139
    %v180 = vunpack.c.l.b16 %v140
    %v181 = vunpack.c.l.b16 %v141
    %v182 = vunpack.c.l.b16 %v142
    %v183 = vunpack.c.l.b16 %v143
    %v184 = vunpack.c.l.b16 %v144
    %v185 = vunpack.c.l.b16 %v145
    %v186 = vunpack.c.l.b16 %v146
    %v187 = vunpack.c.l.b16 %v147
    %v188 = vunpack.c.l.b16 %v148
    %v189 = vunpack.c.l.b16 %v149
    %v190 = vunpack.c.l.b16 %v150
    %v191 = vunpack.c.l.b16 %v151
    %v192 = vunpack.c.l.b16 %v152
    %v193 = vunpack.c.l.b16 %v153
    %v194 = vpack.c.b16 %v179, %v178
    %v195 = vpack.c.b16 %v181, %v180
    %v196 = vpack.c.b16 %v183, %v182
    %v197 = vpack.c.b16 %v185, %v184
    %v198 = vpack.c.b16 %v187, %v186
    %v199 = vpack.c.b16 %v189, %v188
    %v200 = vpack.c.b16 %v191, %v190
    %v201 = vpack.c.b16 %v193, %v192
    %210 = vmatprep.subr.bf16.mxu0 0
    %211 = vmatpush1.bf16.msra.mxu0 %v201
    %212 = vmatprep.subr.bf16.mxu0 0
    %213 = vmatpush1.bf16.msra.mxu0 %v200
    %214 = vmatprep.subr.bf16.mxu0 0
    %215 = vmatpush1.bf16.msra.mxu0 %v199
    %216 = vmatprep.subr.bf16.mxu0 0
    %217 = vmatpush1.bf16.msra.mxu0 %v198
    %218 = vmatprep.subr.bf16.mxu0 0
    %219 = vmatpush1.bf16.msra.mxu0 %v197
    %220 = vmatprep.subr.bf16.mxu0 0
    %221 = vmatpush1.bf16.msra.mxu0 %v196
    %222 = vmatprep.subr.bf16.mxu0 0
    %223 = vmatpush1.bf16.msra.mxu0 %v195
    %224 = vmatprep.subr.bf16.mxu0 0
    %225 = vmatpush1.bf16.msra.mxu0 %v194
    %226 = vmatprep.subr.bf16.mxu0 0
    %227 = vmatpush2.bf16.msra.mxu0 0
    %228 = vmatprep.subr.bf16.mxu0 0
    %229 = vmatpush2.bf16.msra.mxu0 0
    %230 = vmatprep.subr.bf16.mxu0 0
    %231 = vmatpush2.bf16.msra.mxu0 0
    %232 = vmatprep.subr.bf16.mxu0 0
    %233 = vmatpush2.bf16.msra.mxu0 0
    %234 = vmatprep.subr.bf16.mxu0 0
    %235 = vmatpush2.bf16.msra.mxu0 0
    %236 = vmatprep.subr.bf16.mxu0 0
    %237 = vmatpush2.bf16.msra.mxu0 0
    %238 = vmatprep.subr.bf16.mxu0 0
    %239 = vmatpush2.bf16.msra.mxu0 0
    %240 = vmatprep.subr.bf16.mxu0 0
    %241 = vmatpush2.bf16.msra.mxu0 0
    %242 = vmatprep.mubr.bf16.mxu0 0
    %243 = vmatmul.mubr.bf16.gmra.mxu0 %v155
    %v244 = vpop.f32.mrf.mxu0
    %v245 = vadd.f32 %v160, %v244
    %v246 = vpop.f32.mrf.mxu0
    %v247 = vpop.f32.mrf.mxu0
    %v248 = vpop.f32.mrf.mxu0
    %249 = vdwg.mxu0
    %v250 = vmax.f32 %v245, 0.0
    %v251 = vld [vmem:[#allocation8] sm:$0xf]
    %v252 = vld [vmem:[#allocation8 + $0x4] sm:$0xf]
    %v253 = vld [vmem:[#allocation8 + $0x8] sm:$0xf]
    %v254 = vld [vmem:[#allocation8 + $0xc] sm:$0xf]
    %v255 = vld [vmem:[#allocation8 + $0x10] sm:$0xf]
    %v256 = vld [vmem:[#allocation8 + $0x14] sm:$0xf]
    %v257 = vld [vmem:[#allocation8 + $0x18] sm:$0xf]
    %v258 = vld [vmem:[#allocation8 + $0x1c] sm:$0xf]
    %v259 = vld [vmem:[#allocation8 + $0x20] sm:$0xf]
    %v260 = vld [vmem:[#allocation8 + $0x24] sm:$0xf]
    %v261 = vld [vmem:[#allocation8 + $0x28] sm:$0xf]
    %v262 = vld [vmem:[#allocation8 + $0x2c] sm:$0xf]
    %v263 = vld [vmem:[#allocation8 + $0x30] sm:$0xf]
    %v264 = vld [vmem:[#allocation8 + $0x34] sm:$0xf]
    %v265 = vld [vmem:[#allocation8 + $0x38] sm:$0xf]
    %v266 = vld [vmem:[#allocation8 + $0x3c] sm:$0xf]
    %v267 = vld [vmem:[%s6] sm:$0x1]
    %v268 = vpack.c.bf16 %v250, %v250
    %v270 = vlaneseq
    %v271 = vshrl.u32 %v270, 7
    %v272 = vsub.s32 0, %v271
    %v273 = vrot.slane %v267, %v272
    %v291 = vunpack.c.l.b16 %v251
    %v292 = vunpack.c.l.b16 %v252
    %v293 = vunpack.c.l.b16 %v253
    %v294 = vunpack.c.l.b16 %v254
    %v295 = vunpack.c.l.b16 %v255
    %v296 = vunpack.c.l.b16 %v256
    %v297 = vunpack.c.l.b16 %v257
    %v298 = vunpack.c.l.b16 %v258
    %v299 = vunpack.c.l.b16 %v259
    %v300 = vunpack.c.l.b16 %v260
    %v301 = vunpack.c.l.b16 %v261
    %v302 = vunpack.c.l.b16 %v262
    %v303 = vunpack.c.l.b16 %v263
    %v304 = vunpack.c.l.b16 %v264
    %v305 = vunpack.c.l.b16 %v265
    %v306 = vunpack.c.l.b16 %v266
    %v307 = vpack.c.b16 %v292, %v291
    %v308 = vpack.c.b16 %v294, %v293
    %v309 = vpack.c.b16 %v296, %v295
    %v310 = vpack.c.b16 %v298, %v297
    %v311 = vpack.c.b16 %v300, %v299
    %v312 = vpack.c.b16 %v302, %v301
    %v313 = vpack.c.b16 %v304, %v303
    %v314 = vpack.c.b16 %v306, %v305
    %323 = vmatprep.subr.bf16.mxu0 0
    %324 = vmatpush1.bf16.msra.mxu0 %v314
    %325 = vmatprep.subr.bf16.mxu0 0
    %326 = vmatpush1.bf16.msra.mxu0 %v313
    %327 = vmatprep.subr.bf16.mxu0 0
    %328 = vmatpush1.bf16.msra.mxu0 %v312
    %329 = vmatprep.subr.bf16.mxu0 0
    %330 = vmatpush1.bf16.msra.mxu0 %v311
    %331 = vmatprep.subr.bf16.mxu0 0
    %332 = vmatpush1.bf16.msra.mxu0 %v310
    %333 = vmatprep.subr.bf16.mxu0 0
    %334 = vmatpush1.bf16.msra.mxu0 %v309
    %335 = vmatprep.subr.bf16.mxu0 0
    %336 = vmatpush1.bf16.msra.mxu0 %v308
    %337 = vmatprep.subr.bf16.mxu0 0
    %338 = vmatpush1.bf16.msra.mxu0 %v307
    %339 = vmatprep.subr.bf16.mxu0 0
    %340 = vmatpush2.bf16.msra.mxu0 0
    %341 = vmatprep.subr.bf16.mxu0 0
    %342 = vmatpush2.bf16.msra.mxu0 0
    %343 = vmatprep.subr.bf16.mxu0 0
    %344 = vmatpush2.bf16.msra.mxu0 0
    %345 = vmatprep.subr.bf16.mxu0 0
    %346 = vmatpush2.bf16.msra.mxu0 0
    %347 = vmatprep.subr.bf16.mxu0 0
    %348 = vmatpush2.bf16.msra.mxu0 0
    %349 = vmatprep.subr.bf16.mxu0 0
    %350 = vmatpush2.bf16.msra.mxu0 0
    %351 = vmatprep.subr.bf16.mxu0 0
    %352 = vmatpush2.bf16.msra.mxu0 0
    %353 = vmatprep.subr.bf16.mxu0 0
    %354 = vmatpush2.bf16.msra.mxu0 0
    %355 = vmatprep.mubr.bf16.mxu0 0
    %356 = vmatmul.mubr.bf16.gmra.mxu0 %v268
    %v357 = vpop.f32.mrf.mxu0
    %v358 = vadd.f32 %v273, %v357
    %v359 = vpop.f32.mrf.mxu0
    %v360 = vpop.f32.mrf.mxu0
    %v361 = vpop.f32.mrf.mxu0
    %362 = vdwg.mxu0
    %v363 = vlaneseq
    %v364 = vand.u32 %v363, 127
    %vm365 = vcmp.lt.s32.totalorder %v364, 2
    %v366 = vsel %vm365, %v358, -1e+30
    %v367 = vsel %vm93, %v366, -inf
    %368 = vmax.xlane.f32.xlu0 %v367
    %v369 = vpop.xlane.xlu0 %368
    %v370 = vsub.f32 %v366, %v369
    %v371 = vmul.f32 %v370, 1.442695
    %v372 = vpow.pop %v371
    %v373 = vsel %vm93, %v372, 0.0
    %374 = vadd.xlane.f32.xlu0 %v373
    %v375 = vpop.xlane.xlu0 %374
    %v376 = vrcp.pop %v375
    %v377 = vmul.f32 %v372, %v376
    %378 = vst [vmem:[#allocation10] sm:$0x3] %v377
    // Predicated region
    $region46: #{politique_renforce_forward.1} parent=1 // pred_check
      _
    $region47: #{politique_renforce_forward.1} parent=1 // pred_check_branch
      %380 = sbr.rel (0) target = $region49
    $region48: #{politique_renforce_forward.1} parent=1 // pred_region
      %s382 = ssub.s32 32, 32
      %383 = vsyncadd [#allocation4], %s382
      %s385 = sshll.u32 [#allocation10], 4
      %s386 = int_to_ptr.vmem [resolvable:$true] %s385
      %388 = dma.vmem_to_hbm [thread:$0]  %s386, 32, %s7, [#allocation4]
    $region49: #{politique_renforce_forward.1} parent=1 // pred_fallthru
      _
    // Predicated region
    $region50: #{politique_renforce_forward.1} parent=1 // pred_check
      _
    $region51: #{politique_renforce_forward.1} parent=1 // pred_check_branch
      %390 = sbr.rel (0) target = $region53
    $region52: #{politique_renforce_forward.1} parent=1 // pred_region
      %391 = dma.done [#allocation4], 32
    $region53: #{politique_renforce_forward.1} parent=1 // pred_fallthru
      _
    %392 = vsyncpa [#allocation3], 1
    %393 = vsyncpa [#allocation6], 1
    %394 = vsyncpa [#allocation9], 1
    %395 = vsyncpa [#allocation4], 1

</llo_original>
